<compile_context>
chip_gen: v7x
topology: tpu7x:2x2x1
jax: 0.10.0
libtpu: 0.0.40
codegen_flags: <defaults>
</compile_context>

<pallas_src>
from functools import partial

import jax
import jax.numpy as jnp
from jax.experimental import pallas as pl
from jax.experimental.pallas import tpu as pltpu


def _round_up(x, m):
    return (x + m - 1) // m * m


# ----------------------------- Pallas kernel --------------------------------

def _subpixel_matmul_kernel(w_ref, a_ref, b_ref, o_ref):
    # Per (parity, lane-tile) grid step:
    #   w_ref: (Cout, Kp)    bf16  sub-sampled weights for this parity
    #   a_ref: (N, Kp, tS)   bf16  gathered input taps (spatial on lanes)
    #   b_ref: (Cout, tS)    f32   bias + folded coord-channel contribution
    #   o_ref: (N, Cout, tS) f32
    w = w_ref[...]
    b = b_ref[...]
    for n in range(a_ref.shape[0]):          # N is small and static -> unrolls
        o_ref[n] = (jnp.dot(w, a_ref[n], preferred_element_type=jnp.float32)
                    + b).astype(o_ref.dtype)


# ------------------------------ glue helpers ---------------------------------

def _coord_channels(H, W, radius_channel, dtype=jnp.float32):
    # Matches PyTorch AddCoords (which only concatenates correctly for H == W;
    # normalization axes follow the source exactly).
    jj = jnp.broadcast_to(jnp.arange(W, dtype=dtype)[None, :], (H, W))
    ii = jnp.broadcast_to(jnp.arange(H, dtype=dtype)[:, None], (H, W))
    xx = jj / float(H - 1) * 2.0 - 1.0
    yy = ii / float(W - 1) * 2.0 - 1.0
    chans = [xx, yy]
    if radius_channel:
        chans.append(jnp.sqrt((xx - 0.5) ** 2 + (yy - 0.5) ** 2))
    return jnp.stack(chans, axis=0)          # (ncoord, H, W)


def _parity_taps(k, s, p):
    """Per output parity r in [0, s): list of (kernel tap kk, input shift d)
    such that out[o] (o = q*s + r) receives x[q + d] * w[kk]."""
    out = []
    for r in range(s):
        out.append([(kk, (r + p - kk) // s)
                    for kk in range(k) if (r + p - kk) % s == 0])
    return out


# --------------------------- CoordConvTranspose ------------------------------

def coord_conv_transpose(x, weight, bias, *, radius_channel, stride, padding,
                         output_padding):
    """x: (N, C, H, W); weight: (C + ncoord, Cout, kH, kW); bias: (Cout,)."""
    N, C, H, W = x.shape
    Cin_aug, Cout, kH, kW = weight.shape
    ncoord = 2 + (1 if radius_channel else 0)
    assert Cin_aug == C + ncoord, (Cin_aug, C, ncoord)
    # AddCoords as written in the PyTorch module only works for square inputs.
    assert H == W, "CoordConvTranspose (AddCoords) requires H == W"
    s, p, op = int(stride), int(padding), int(output_padding)
    assert s >= 1 and p >= 0
    assert 0 <= op < s, "output_padding must be smaller than stride"
    OH = (H - 1) * s - 2 * p + kH + op
    OW = (W - 1) * s - 2 * p + kW + op
    assert OH > 0 and OW > 0, (OH, OW)

    # Per-parity output extents (padded up so every parity has the same shape;
    # the few spurious rows/cols are sliced away at the end).
    OHp = -(-OH // s)
    OWp = -(-OW // s)
    S = OHp * OWp
    Sp = _round_up(S, 128)                       # lane-dense M axis per image

    taps_h = _parity_taps(kH, s, p)
    taps_w = _parity_taps(kW, s, p)

    # Pad the *un-dilated* input once so every tap is an in-bounds slice;
    # out-of-range taps read zeros, matching ConvTranspose2d (no negative pads,
    # works for any padding value).
    all_dh = [d for lst in taps_h for (_, d) in lst]
    all_dw = [d for lst in taps_w for (_, d) in lst]
    pad_hl = max(0, -min(all_dh, default=0))
    pad_hr = max(0, OHp + max(all_dh, default=0) - H)
    pad_wl = max(0, -min(all_dw, default=0))
    pad_wr = max(0, OWp + max(all_dw, default=0) - W)
    x_pad = jnp.pad(x.astype(jnp.float32),
                    ((0, 0), (0, 0), (pad_hl, pad_hr), (pad_wl, pad_wr)))
    coords = _coord_channels(H, W, radius_channel)            # (ncoord, H, W)
    coords_pad = jnp.pad(coords, ((0, 0), (pad_hl, pad_hr), (pad_wl, pad_wr)))

    nth_max = max(len(t) for t in taps_h)
    ntw_max = max(len(t) for t in taps_w)
    Kp = max(16, _round_up(C * nth_max * ntw_max, 16))   # bf16 sublane packing

    w_data = weight[:C].astype(jnp.float32)       # (C, Cout, kH, kW)
    w_coord = weight[C:].astype(jnp.float32)      # (ncoord, Cout, kH, kW)
    bias_f32 = bias.astype(jnp.float32)

    A_list, W_list, B_list = [], [], []
    for rh in range(s):
        for rw in range(s):
            th, tw = taps_h[rh], taps_w[rw]
            ntaps = len(th) * len(tw)
            if ntaps:
                a_rows, ac_rows = [], []
                for kh, dh in th:
                    h0 = dh + pad_hl
                    for kw, dw in tw:
                        w0 = dw + pad_wl
                        sl = x_pad[:, :, h0:h0 + OHp, w0:w0 + OWp]
                        a_rows.append(sl.reshape(N, C, S))
                        slc = coords_pad[:, h0:h0 + OHp, w0:w0 + OWp]
                        ac_rows.append(slc.reshape(ncoord, S))
                A_par = jnp.concatenate(a_rows, axis=1)        # (N, ntaps*C, S)
                Ac_par = jnp.concatenate(ac_rows, axis=0)      # (ntaps*nc, S)
                kh_idx = [kh for kh, _ in th]
                kw_idx = [kw for kw, _ in tw]
                wsub = w_data[:, :, kh_idx][:, :, :, kw_idx]   # (C,Cout,nth,ntw)
                W_par = wsub.transpose(1, 2, 3, 0).reshape(Cout, ntaps * C)
                wsubc = w_coord[:, :, kh_idx][:, :, :, kw_idx]
                Wc_par = wsubc.transpose(1, 2, 3, 0).reshape(Cout, ntaps * ncoord)
                # Constant coordinate-channel contribution, folded into the
                # per-output-position bias map in full f32 precision.
                coord_map = jnp.dot(Wc_par, Ac_par,
                                    preferred_element_type=jnp.float32,
                                    precision=jax.lax.Precision.HIGHEST)
            else:
                A_par = jnp.zeros((N, 0, S), jnp.float32)
                W_par = jnp.zeros((Cout, 0), jnp.float32)
                coord_map = jnp.zeros((Cout, S), jnp.float32)
            K_par = W_par.shape[1]
            A_list.append(jnp.pad(A_par, ((0, 0), (0, Kp - K_par), (0, Sp - S))))
            W_list.append(jnp.pad(W_par, ((0, 0), (0, Kp - K_par))))
            B_list.append(jnp.pad(bias_f32[:, None] + coord_map,
                                  ((0, 0), (0, Sp - S))))

    P = s * s
    A = jnp.stack(A_list).astype(jnp.bfloat16)        # (P, N, Kp, Sp)
    Wm = jnp.stack(W_list).astype(jnp.bfloat16)       # (P, Cout, Kp)
    Bm = jnp.stack(B_list)                            # (P, Cout, Sp) f32

    # Lane tiling: for stride >= 2 the parity axis already gives >= 4 parallel
    # grid steps (v7x gets both TensorCores); only for stride == 1 split lanes.
    if P >= 2 or Sp < 256:
        tS = Sp
    else:
        tS = Sp // 2 if (Sp // 2) % 128 == 0 else Sp
    n_s = Sp // tS

    # Explicit VMEM budget: double-buffered blocks + headroom, capped well
    # below v7x's default 32 MiB scoped / 64 MiB physical VMEM.
    blk_bytes = (N * Kp * tS + Cout * Kp) * 2 + (Cout * tS + N * Cout * tS) * 4
    vmem_limit = int(min(32 * 1024 * 1024, max(2 * 1024 * 1024, 6 * blk_bytes)))

    out = pl.pallas_call(
        _subpixel_matmul_kernel,
        out_shape=jax.ShapeDtypeStruct((P, N, Cout, Sp), jnp.float32),
        grid=(P, n_s),
        in_specs=[
            pl.BlockSpec((None, Cout, Kp), lambda pi, mi: (pi, 0, 0)),
            pl.BlockSpec((None, N, Kp, tS), lambda pi, mi: (pi, 0, 0, mi)),
            pl.BlockSpec((None, Cout, tS), lambda pi, mi: (pi, 0, mi)),
        ],
        out_specs=pl.BlockSpec((None, N, Cout, tS),
                               lambda pi, mi: (pi, 0, 0, mi)),
        compiler_params=pltpu.CompilerParams(
            dimension_semantics=("parallel", "parallel"),
            vmem_limit_bytes=vmem_limit),
    )(Wm, A, Bm)

    # (P, N, Cout, Sp) -> interleave parities -> (N, Cout, OH, OW)
    out = out[..., :S].reshape(s, s, N, Cout, OHp, OWp)
    out = out.transpose(2, 3, 4, 0, 5, 1).reshape(N, Cout, OHp * s, OWp * s)
    return out[:, :, :OH, :OW]


# ----------------------------------- main ------------------------------------

if __name__ == "__main__":
    key = jax.random.PRNGKey(0)
    k1, k2, k3 = jax.random.split(key, 3)

    # CoordConvTranspose(radius_channel=True, in_channels=7, out_channels=8,
    #                    kernel_size=3, stride=2, padding=1, output_padding=1)
    N, C, H, W = 2, 4, 16, 16
    radius_channel = True
    Cin_aug = C + 3                      # +xx, +yy, +radius
    Cout, kH, kW = 8, 3, 3
    stride, padding, output_padding = 2, 1, 1

    x = jax.random.normal(k1, (N, C, H, W), jnp.float32)
    bound = 1.0 / (Cin_aug * kH * kW) ** 0.5
    weight = jax.random.uniform(k2, (Cin_aug, Cout, kH, kW), jnp.float32,
                                -bound, bound)
    bias = jax.random.uniform(k3, (Cout,), jnp.float32, -bound, bound)

    fwd = jax.jit(partial(coord_conv_transpose,
                          radius_channel=radius_channel, stride=stride,
                          padding=padding, output_padding=output_padding))
    out = jax.block_until_ready(fwd(x, weight, bias))

    # --------- sanity reference (plain JAX / XLA), NCHW convT semantics ------
    # The kernel feeds the data path to the MXU in bf16, so the reference uses
    # the same bf16-rounded data inputs (coord channels / bias stay f32) and a
    # HIGHEST-precision f32 conv; remaining diff is accumulation-order noise.
    def _q(v):
        return v.astype(jnp.bfloat16).astype(jnp.float32)

    jj = jnp.broadcast_to(jnp.arange(W, dtype=jnp.float32)[None, None, None, :],
                          (N, 1, H, W))
    ii = jnp.broadcast_to(jnp.arange(H, dtype=jnp.float32)[None, None, :, None],
                          (N, 1, H, W))
    xx = jj / (H - 1) * 2.0 - 1.0
    yy = ii / (W - 1) * 2.0 - 1.0
    chans = [_q(x), xx, yy]
    if radius_channel:
        chans.append(jnp.sqrt((xx - 0.5) ** 2 + (yy - 0.5) ** 2))
    x_aug_ref = jnp.concatenate(chans, axis=1)
    w_ref_full = weight.astype(jnp.float32).at[:C].set(_q(weight[:C]))
    wf_ref = jnp.flip(w_ref_full, axis=(2, 3)).transpose(1, 0, 2, 3)   # OIHW
    ref = jax.lax.conv_general_dilated(
        x_aug_ref, wf_ref, window_strides=(1, 1),
        padding=[(kH - 1 - padding, kH - 1 - padding + output_padding)] * 2,
        lhs_dilation=(stride, stride),
        dimension_numbers=("NCHW", "OIHW", "NCHW"),
        precision=jax.lax.Precision.HIGHEST,
    ) + bias[None, :, None, None]

    OH = (H - 1) * stride - 2 * padding + kH + output_padding
    OW = (W - 1) * stride - 2 * padding + kW + output_padding
    assert out.shape == (N, Cout, OH, OW), out.shape
    assert jnp.allclose(out, ref, atol=1e-3, rtol=1e-3), float(
        jnp.max(jnp.abs(out - ref)))

    print("KERNEL_OK")
</pallas_src>

<mosaic_0001>
module attributes {stable_mosaic.version = 11 : i64} {
  func.func @_subpixel_matmul_kernel(%arg0: i32, %arg1: i32, %arg2: memref<1x8x16xbf16, #tpu.memory_space<vmem>>, %arg3: memref<1x2x16x256xbf16, #tpu.memory_space<vmem>>, %arg4: memref<1x8x256xf32, #tpu.memory_space<vmem>>, %arg5: memref<1x2x8x256xf32, #tpu.memory_space<vmem>>) attributes {dimension_semantics = [#tpu.dimension_semantics<parallel>, #tpu.dimension_semantics<parallel>], iteration_bounds = array<i64: 4, 1>, scalar_prefetch = 0 : i64, scratch_operands = 0 : i64, tpu.core_type = #tpu.core_type<tc>, window_params = [{transform_indices = @transform_0, window_bounds = array<i64: 1, 8, 16>}, {transform_indices = @transform_1, window_bounds = array<i64: 1, 2, 16, 256>}, {transform_indices = @transform_2, window_bounds = array<i64: 1, 8, 256>}, {transform_indices = @transform_3, window_bounds = array<i64: 1, 2, 8, 256>}]} {
    %c0 = arith.constant 0 : index
    %c0_0 = arith.constant 0 : index
    %c0_1 = arith.constant 0 : index
    %0 = vector.load %arg2[%c0, %c0_0, %c0_1] : memref<1x8x16xbf16, #tpu.memory_space<vmem>>, vector<1x8x16xbf16>
    %1 = vector.shape_cast %0 : vector<1x8x16xbf16> to vector<8x16xbf16>
    %c0_2 = arith.constant 0 : index
    %c0_3 = arith.constant 0 : index
    %c0_4 = arith.constant 0 : index
    %2 = vector.load %arg4[%c0_2, %c0_3, %c0_4] : memref<1x8x256xf32, #tpu.memory_space<vmem>>, vector<1x8x256xf32>
    %3 = vector.shape_cast %2 : vector<1x8x256xf32> to vector<8x256xf32>
    %c0_5 = arith.constant 0 : index
    %c0_6 = arith.constant 0 : index
    %c0_7 = arith.constant 0 : index
    %c0_8 = arith.constant 0 : index
    %4 = vector.load %arg3[%c0_5, %c0_6, %c0_7, %c0_8] : memref<1x2x16x256xbf16, #tpu.memory_space<vmem>>, vector<1x1x16x256xbf16>
    %5 = vector.shape_cast %4 : vector<1x1x16x256xbf16> to vector<16x256xbf16>
    %cst = arith.constant dense<0.000000e+00> : vector<8x256xf32>
    %6 = tpu.matmul %1, %5, %cst {dimension_numbers = #tpu.dot_dimension_numbers<[1], [0], [0], [1], [0, 0, 1, 1], [], []>} : vector<8x16xbf16>, vector<16x256xbf16>, vector<8x256xf32> -> vector<8x256xf32>
    %7 = arith.addf %6, %3 : vector<8x256xf32>
    %c0_9 = arith.constant 0 : index
    %c0_10 = arith.constant 0 : index
    %c0_11 = arith.constant 0 : index
    %c0_12 = arith.constant 0 : index
    %8 = vector.load %arg5[%c0_9, %c0_10, %c0_11, %c0_12] : memref<1x2x8x256xf32, #tpu.memory_space<vmem>>, vector<1x1x8x256xf32>
    %9 = vector.shape_cast %8 : vector<1x1x8x256xf32> to vector<8x256xf32>
    %10 = vector.shape_cast %7 : vector<8x256xf32> to vector<1x1x8x256xf32>
    tpu.vector_store %arg5[%c0_9, %c0_10, %c0_11, %c0_12], %10 {strides = array<i32>} : memref<1x2x8x256xf32, #tpu.memory_space<vmem>>, vector<1x1x8x256xf32>,
    %c0_13 = arith.constant 0 : index
    %c1 = arith.constant 1 : index
    %c0_14 = arith.constant 0 : index
    %c0_15 = arith.constant 0 : index
    %11 = vector.load %arg3[%c0_13, %c1, %c0_14, %c0_15] : memref<1x2x16x256xbf16, #tpu.memory_space<vmem>>, vector<1x1x16x256xbf16>
    %12 = vector.shape_cast %11 : vector<1x1x16x256xbf16> to vector<16x256xbf16>
    %cst_16 = arith.constant dense<0.000000e+00> : vector<8x256xf32>
    %13 = tpu.matmul %1, %12, %cst_16 {dimension_numbers = #tpu.dot_dimension_numbers<[1], [0], [0], [1], [0, 0, 1, 1], [], []>} : vector<8x16xbf16>, vector<16x256xbf16>, vector<8x256xf32> -> vector<8x256xf32>
    %14 = arith.addf %13, %3 : vector<8x256xf32>
    %c0_17 = arith.constant 0 : index
    %c1_18 = arith.constant 1 : index
    %c0_19 = arith.constant 0 : index
    %c0_20 = arith.constant 0 : index
    %15 = vector.load %arg5[%c0_17, %c1_18, %c0_19, %c0_20] : memref<1x2x8x256xf32, #tpu.memory_space<vmem>>, vector<1x1x8x256xf32>
    %16 = vector.shape_cast %15 : vector<1x1x8x256xf32> to vector<8x256xf32>
    %17 = vector.shape_cast %14 : vector<8x256xf32> to vector<1x1x8x256xf32>
    tpu.vector_store %arg5[%c0_17, %c1_18, %c0_19, %c0_20], %17 {strides = array<i32>} : memref<1x2x8x256xf32, #tpu.memory_space<vmem>>, vector<1x1x8x256xf32>,
    return
  }
  func.func @transform_0(%arg0: i32, %arg1: i32) -> (i32, i32, i32) {
    %c0_i32 = arith.constant 0 : i32
    %c0_i32_0 = arith.constant 0 : i32
    %c0_i32_1 = arith.constant 0 : i32
    return %arg0, %c0_i32, %c0_i32_0 : i32, i32, i32
  }
  func.func @transform_1(%arg0: i32, %arg1: i32) -> (i32, i32, i32, i32) {
    %c0_i32 = arith.constant 0 : i32
    %c0_i32_0 = arith.constant 0 : i32
    %c0_i32_1 = arith.constant 0 : i32
    return %arg0, %c0_i32, %c0_i32_0, %arg1 : i32, i32, i32, i32
  }
  func.func @transform_2(%arg0: i32, %arg1: i32) -> (i32, i32, i32) {
    %c0_i32 = arith.constant 0 : i32
    %c0_i32_0 = arith.constant 0 : i32
    return %arg0, %c0_i32, %arg1 : i32, i32, i32
  }
  func.func @transform_3(%arg0: i32, %arg1: i32) -> (i32, i32, i32, i32) {
    %c0_i32 = arith.constant 0 : i32
    %c0_i32_0 = arith.constant 0 : i32
    %c0_i32_1 = arith.constant 0 : i32
    return %arg0, %c0_i32, %c0_i32_0, %arg1 : i32, i32, i32, i32
  }
}

</mosaic_0001>

<llo_original>
// kernel: coord_conv_transpose.1
$region0: #{coord_conv_transpose.1}
  #allocation0 [shape = 'u32[]', space=smem, size = 0x4, offset = 0x4, fixed_abs, tag = 'smem constant byte address 0x4 - core index']
  #allocation1 [shape = 'u32[144,128]{1,0:T(1,128)}', space=vmem, size = 0x12000, scoped, tag = 'internal scratch']
  %s0 = inlined_call_operand.vmem [shape: bf16[4,8,16], index: 0, kind: input, shape index: {}]
  %s1 = inlined_call_operand.vmem [shape: bf16[4,2,16,256], index: 1, kind: input, shape index: {}]
  %s2 = inlined_call_operand.vmem [shape: f32[4,8,256], index: 2, kind: input, shape index: {}]
  %s3 = inlined_call_operand.vmem [shape: f32[4,2,8,256], index: 3, kind: output, shape index: {}]
  %s4 = sld [smem:[#allocation0]]
  $region45: #{coord_conv_transpose.1} parent=0
    _
  %s6 = ssub.s32 1, %s4
  %s7 = scalar_select 0, %s6, %s4
  loop: start=0, step=1, limit=6
  $region2: #{coord_conv_transpose.1} parent=0 // loop_pre_header
    _
  $region3: #{coord_conv_transpose.1} parent=0 // loop_header
    %s9 = sphi 0, %s13
    %p10 = scmp.ge.s32.totalorder %s9, 6
    %s16 = sphi 0, %s28
    %s17 = sphi 0, %s24
    %s18 = sphi 0, %s16
    %s19 = sphi 0, %s17
    %s20 = sphi 0, %s18
    %s21 = sphi 0, %s19
    %s31 = sphi 0, %s33
    %s34 = sphi 0, %s31
    %s35 = sphi 0, %s34
    %s51 = sphi 0, %s35
    %s59 = sphi 0, %s61
    %s62 = sphi 0, %s59
    %s63 = sphi 0, %s62
    %s79 = sphi 0, %s63
    %s87 = sphi 0, %s89
    %s90 = sphi 0, %s87
    %s91 = sphi 0, %s90
    %s107 = sphi 0, %s91
    %s115 = sphi 0, %s117
    %s118 = sphi 0, %s115
    %s119 = sphi 0, %s118
    %s135 = sphi 0, %s119
  $region4: #{coord_conv_transpose.1} parent=0 // loop_header_branch
    %12 = sbr.rel (%p10) target = $region8
  $region5: #{coord_conv_transpose.1} parent=0 // loop_body
    %s14 = ssub.s32 %s9, 1
    %s15 = ssub.s32 %s9, 2
    %s22 = sadd.s32 1, %s17
    %p23 = scmp.ge.s32.totalorder %s22, 1
    %s24 = scalar_select %p23, 0, %s22
    %s25 = sadd.s32 1, %s16
    %s26 = scalar_select %p23, %s25, %s16
    %p27 = scmp.ge.s32.totalorder %s26, 4
    %s28 = scalar_select %p27, 0, %s26
    %s29 = ssub.s32 %s16, %s28
    %p30 = scmp.eq.s32.totalorder %s29, 0
    %s32 = sadd.s32 %s31, 1
    %s33 = scalar_select %p30, %s31, %s32
    %p36 = pneg %p30
    %p37 = scmp.eq.s32.totalorder %s9, 3
    %p38 = por %p36, %p37
    %p39 = scmp.ne.s32.totalorder %s31, %s34
    %p40 = scmp.eq.s32.totalorder %s9, 0
    %p41 = por %p39, %p40
    %p42 = scmp.ne.s32.totalorder %s31, %s34
    %p43 = scmp.eq.s32.totalorder %s14, 3
    %p44 = por %p42, %p43
    %p45 = scmp.ne.s32.totalorder %s34, %s35
    %p46 = scmp.eq.s32.totalorder %s14, 0
    %p47 = por %p45, %p46
    %p48 = scmp.ne.s32.totalorder %s34, %s35
    %p49 = scmp.eq.s32.totalorder %s15, 3
    %p50 = por %p48, %p49
    %p52 = scmp.ne.s32.totalorder %s35, %s51
    %p53 = scmp.eq.s32.totalorder %s15, 0
    %p54 = por %p52, %p53
    %s55 = ssub.s32 %s16, %s28
    %s56 = ssub.s32 %s17, %s24
    %s57 = sor.u32 %s55, %s56
    %p58 = scmp.eq.s32.totalorder %s57, 0
    %s60 = sadd.s32 %s59, 1
    %s61 = scalar_select %p58, %s59, %s60
    %p64 = pneg %p58
    %p65 = scmp.eq.s32.totalorder %s9, 3
    %p66 = por %p64, %p65
    %p67 = scmp.ne.s32.totalorder %s59, %s62
    %p68 = scmp.eq.s32.totalorder %s9, 0
    %p69 = por %p67, %p68
    %p70 = scmp.ne.s32.totalorder %s59, %s62
    %p71 = scmp.eq.s32.totalorder %s14, 3
    %p72 = por %p70, %p71
    %p73 = scmp.ne.s32.totalorder %s62, %s63
    %p74 = scmp.eq.s32.totalorder %s14, 0
    %p75 = por %p73, %p74
    %p76 = scmp.ne.s32.totalorder %s62, %s63
    %p77 = scmp.eq.s32.totalorder %s15, 3
    %p78 = por %p76, %p77
    %p80 = scmp.ne.s32.totalorder %s63, %s79
    %p81 = scmp.eq.s32.totalorder %s15, 0
    %p82 = por %p80, %p81
    %s83 = ssub.s32 %s16, %s28
    %s84 = ssub.s32 %s17, %s24
    %s85 = sor.u32 %s83, %s84
    %p86 = scmp.eq.s32.totalorder %s85, 0
    %s88 = sadd.s32 %s87, 1
    %s89 = scalar_select %p86, %s87, %s88
    %p92 = pneg %p86
    %p93 = scmp.eq.s32.totalorder %s9, 3
    %p94 = por %p92, %p93
    %p95 = scmp.ne.s32.totalorder %s87, %s90
    %p96 = scmp.eq.s32.totalorder %s9, 0
    %p97 = por %p95, %p96
    %p98 = scmp.ne.s32.totalorder %s87, %s90
    %p99 = scmp.eq.s32.totalorder %s14, 3
    %p100 = por %p98, %p99
    %p101 = scmp.ne.s32.totalorder %s90, %s91
    %p102 = scmp.eq.s32.totalorder %s14, 0
    %p103 = por %p101, %p102
    %p104 = scmp.ne.s32.totalorder %s90, %s91
    %p105 = scmp.eq.s32.totalorder %s15, 3
    %p106 = por %p104, %p105
    %p108 = scmp.ne.s32.totalorder %s91, %s107
    %p109 = scmp.eq.s32.totalorder %s15, 0
    %p110 = por %p108, %p109
    %s111 = ssub.s32 %s16, %s28
    %s112 = ssub.s32 %s17, %s24
    %s113 = sor.u32 %s111, %s112
    %p114 = scmp.eq.s32.totalorder %s113, 0
    %s116 = sadd.s32 %s115, 1
    %s117 = scalar_select %p114, %s115, %s116
    %p120 = pneg %p114
    %p121 = scmp.eq.s32.totalorder %s9, 3
    %p122 = por %p120, %p121
    %p123 = scmp.ne.s32.totalorder %s115, %s118
    %p124 = scmp.eq.s32.totalorder %s9, 0
    %p125 = por %p123, %p124
    %p126 = scmp.ne.s32.totalorder %s115, %s118
    %p127 = scmp.eq.s32.totalorder %s14, 3
    %p128 = por %p126, %p127
    %p129 = scmp.ne.s32.totalorder %s118, %s119
    %p130 = scmp.eq.s32.totalorder %s14, 0
    %p131 = por %p129, %p130
    %p132 = scmp.ne.s32.totalorder %s118, %s119
    %p133 = scmp.eq.s32.totalorder %s15, 3
    %p134 = por %p132, %p133
    %p136 = scmp.ne.s32.totalorder %s119, %s135
    %p137 = scmp.eq.s32.totalorder %s15, 0
    %p138 = por %p136, %p137
    %p139 = scmp.le.s32.totalorder 1, %s9
    %p140 = scmp.lt.s32.totalorder %s9, 5
    %p141 = pnand %p139, %p140
    %p142 = pneg %p141
    // Predicated region
    $region9: #{coord_conv_transpose.1} parent=5 // pred_check
      _
    $region10: #{coord_conv_transpose.1} parent=5 // pred_check_branch
      %144 = sbr.rel (%p141) target = $region12
    $region11: #{coord_conv_transpose.1} parent=5 // pred_region
      %s145 = ssub.s32 %s9, 1
    $region12: #{coord_conv_transpose.1} parent=5 // pred_fallthru
      _
    %p146 = scmp.lt.s32.totalorder %s9, 4
    // Predicated region
    $region13: #{coord_conv_transpose.1} parent=5 // pred_check
      %p147 = pneg %p146
    $region14: #{coord_conv_transpose.1} parent=5 // pred_check_branch
      %149 = sbr.rel (%p147) target = $region16
    $region15: #{coord_conv_transpose.1} parent=5 // pred_region
      // Predicated region
      $region17: #{coord_conv_transpose.1} parent=15 // pred_check
        %p150 = pneg %p41
      $region18: #{coord_conv_transpose.1} parent=15 // pred_check_branch
        %152 = sbr.rel (%p150) target = $region20
      $region19: #{coord_conv_transpose.1} parent=15 // pred_region
        %p153 = scmp.lt.s32.totalorder %s16, 3
        %s154 = scalar_select %p153, %s16, 3
        %s155 = smul.addr %s154, 4
        %s156 = scalar_lea.vmem %s0, %s155
      $region20: #{coord_conv_transpose.1} parent=15 // pred_fallthru
        _
      // Predicated region
      $region21: #{coord_conv_transpose.1} parent=15 // pred_check
        %p157 = pneg %p69
      $region22: #{coord_conv_transpose.1} parent=15 // pred_check_branch
        %159 = sbr.rel (%p157) target = $region24
      $region23: #{coord_conv_transpose.1} parent=15 // pred_region
        %s160 = smul.u32 2, %s17
        %p161 = scmp.lt.s32.totalorder %s16, 3
        %s162 = scalar_select %p161, %s16, 3
        %p163 = scmp.lt.s32.totalorder %s160, 1
        %s164 = scalar_select %p163, %s160, 1
        %s165 = smul.addr %s162, 8
        %s166 = sadd.s32 %s164, %s165
        %s167 = smul.addr %s166, 4
        %s168 = scalar_lea.vmem %s1, %s167
        %s169 = smul.u32 2, %s17
      $region24: #{coord_conv_transpose.1} parent=15 // pred_fallthru
        _
      // Predicated region
      $region25: #{coord_conv_transpose.1} parent=15 // pred_check
        %p170 = pneg %p97
      $region26: #{coord_conv_transpose.1} parent=15 // pred_check_branch
        %172 = sbr.rel (%p170) target = $region28
      $region27: #{coord_conv_transpose.1} parent=15 // pred_region
        %s173 = smul.u32 2, %s17
        %p174 = scmp.lt.s32.totalorder %s16, 3
        %s175 = scalar_select %p174, %s16, 3
        %p176 = scmp.lt.s32.totalorder %s173, 1
        %s177 = scalar_select %p176, %s173, 1
        %s178 = smul.addr %s175, 2
        %s179 = sadd.s32 %s177, %s178
        %s180 = smul.addr %s179, 8
        %s181 = scalar_lea.vmem %s2, %s180
        %s182 = smul.u32 2, %s17
      $region28: #{coord_conv_transpose.1} parent=15 // pred_fallthru
        _
    $region16: #{coord_conv_transpose.1} parent=5 // pred_fallthru
      _
    %p183 = scmp.le.s32.totalorder 1, %s9
    %p184 = scmp.lt.s32.totalorder %s9, 5
    %p185 = pnand %p183, %p184
    %p186 = pneg %p185
    // Predicated region
    $region29: #{coord_conv_transpose.1} parent=5 // pred_check
      _
    $region30: #{coord_conv_transpose.1} parent=5 // pred_check_branch
      %188 = sbr.rel (%p185) target = $region32
    $region31: #{coord_conv_transpose.1} parent=5 // pred_region
      %s189 = ssub.s32 %s9, 1
      %p190 = scmp.lt.s32.totalorder %s18, 3
      %s191 = scalar_select %p190, %s18, 3
      %s192 = smul.addr %s191, 4
      %s193 = scalar_lea.vmem %s0, %s192
      %p194 = pneg %p47
      %p195 = pneg %p44
      %s196 = smul.u32 2, %s19
      %p197 = scmp.lt.s32.totalorder %s18, 3
      %s198 = scalar_select %p197, %s18, 3
      %p199 = scmp.lt.s32.totalorder %s196, 1
      %s200 = scalar_select %p199, %s196, 1
      %s201 = smul.addr %s198, 8
      %s202 = sadd.s32 %s200, %s201
      %s203 = smul.addr %s202, 4
      %s204 = scalar_lea.vmem %s1, %s203
      %p205 = pneg %p75
      %p206 = pneg %p72
      %s207 = smul.u32 2, %s19
      %p208 = scmp.lt.s32.totalorder %s18, 3
      %s209 = scalar_select %p208, %s18, 3
      %p210 = scmp.lt.s32.totalorder %s207, 1
      %s211 = scalar_select %p210, %s207, 1
      %s212 = smul.addr %s209, 2
      %s213 = sadd.s32 %s211, %s212
      %s214 = smul.addr %s213, 8
      %s215 = scalar_lea.vmem %s2, %s214
      %p216 = pneg %p103
      %p217 = pneg %p100
      %p218 = pneg %p131
      %p219 = pneg %p128
      %s220 = smul.u32 2, %s19
      %p221 = scmp.lt.s32.totalorder %s18, 3
      %s222 = scalar_select %p221, %s18, 3
      %p223 = scmp.lt.s32.totalorder %s220, 1
      %s224 = scalar_select %p223, %s220, 1
      %s225 = smul.addr %s222, 4
      %s226 = sadd.s32 %s224, %s225
      %s227 = smul.addr %s226, 8
      %s228 = scalar_lea.vmem %s3, %s227
      %p229 = scmp.lt.s32.totalorder %s18, 3
      %s230 = scalar_select %p229, %s18, 3
      %s231 = smul.addr %s230, 4
      %s232 = scalar_lea.vmem %s0, %s231
      %s233 = smul.u32 2, %s19
      %p234 = scmp.lt.s32.totalorder %s18, 3
      %s235 = scalar_select %p234, %s18, 3
      %p236 = scmp.lt.s32.totalorder %s233, 1
      %s237 = scalar_select %p236, %s233, 1
      %s238 = smul.addr %s235, 8
      %s239 = sadd.s32 %s237, %s238
      %s240 = smul.addr %s239, 4
      %s241 = scalar_lea.vmem %s1, %s240
      %s242 = smul.u32 2, %s19
      %s243 = smul.u32 2, %s19
      %p244 = scmp.lt.s32.totalorder %s18, 3
      %s245 = scalar_select %p244, %s18, 3
      %p246 = scmp.lt.s32.totalorder %s243, 1
      %s247 = scalar_select %p246, %s243, 1
      %s248 = smul.addr %s245, 2
      %s249 = sadd.s32 %s247, %s248
      %s250 = smul.addr %s249, 8
      %s251 = scalar_lea.vmem %s2, %s250
      %s252 = smul.u32 2, %s19
      %s253 = smul.u32 2, %s19
      %p254 = scmp.lt.s32.totalorder %s18, 3
      %s255 = scalar_select %p254, %s18, 3
      %p256 = scmp.lt.s32.totalorder %s253, 1
      %s257 = scalar_select %p256, %s253, 1
      %s258 = smul.addr %s255, 4
      %s259 = sadd.s32 %s257, %s258
      %s260 = smul.addr %s259, 8
      %s261 = scalar_lea.vmem %s3, %s260
      %s262 = smul.u32 2, %s19
      %v264 = vld [vmem:[%s232] sm:$0xf]
      %v265 = vld [vmem:[%s251] sm:$0xff]
      %v266 = vld [vmem:[%s251 + $0x8] sm:$0xff]
      %v267 = vld [vmem:[%s241] sm:$0xff]
      %v268 = vld [vmem:[%s241 + $0x8] sm:$0xff]
      %v271 = vunpack.c.l.b16 %v267
      %v272 = vunpack.c.h.b16 %v267
      %v273 = vunpack.c.l.b16 %v268
      %v274 = vunpack.c.h.b16 %v268
      %v275 = vpack.c.b16 %v273, %v271
      %v276 = vpack.c.b16 %v274, %v272
      %vm279 = vcmask 130048
      %v281 = vsel %vm279, %v264, 0
      %283 = vmatprep.subr.bf16.mxu0 %v276
      %284 = vmatpush1.bf16.msra.mxu0 %v275
      %285 = vmatprep.subr.bf16.mxu0 0
      %286 = vmatpush1.bf16.msra.mxu0 0
      %287 = vmatprep.subr.bf16.mxu0 0
      %288 = vmatpush1.bf16.msra.mxu0 0
      %289 = vmatprep.subr.bf16.mxu0 0
      %290 = vmatpush1.bf16.msra.mxu0 0
      %291 = vmatprep.subr.bf16.mxu0 0
      %292 = vmatpush1.bf16.msra.mxu0 0
      %293 = vmatprep.subr.bf16.mxu0 0
      %294 = vmatpush1.bf16.msra.mxu0 0
      %295 = vmatprep.subr.bf16.mxu0 0
      %296 = vmatpush1.bf16.msra.mxu0 0
      %297 = vmatprep.subr.bf16.mxu0 0
      %298 = vmatpush1.bf16.msra.mxu0 0
      %299 = vmatprep.subr.bf16.mxu0 0
      %300 = vmatpush1.bf16.msra.mxu0 0
      %301 = vmatprep.subr.bf16.mxu0 0
      %302 = vmatpush1.bf16.msra.mxu0 0
      %303 = vmatprep.subr.bf16.mxu0 0
      %304 = vmatpush1.bf16.msra.mxu0 0
      %305 = vmatprep.subr.bf16.mxu0 0
      %306 = vmatpush1.bf16.msra.mxu0 0
      %307 = vmatprep.subr.bf16.mxu0 0
      %308 = vmatpush1.bf16.msra.mxu0 0
      %309 = vmatprep.subr.bf16.mxu0 0
      %310 = vmatpush1.bf16.msra.mxu0 0
      %311 = vmatprep.subr.bf16.mxu0 0
      %312 = vmatpush1.bf16.msra.mxu0 0
      %313 = vmatprep.subr.bf16.mxu0 0
      %314 = vmatpush1.bf16.msra.mxu0 0
      %315 = vmatprep.mubr.bf16.mxu0 0
      %316 = vmatmul.mubr.bf16.gmra.mrb[0].mxu0 %v281
      %v317 = vpop.f32.mrb[0].mxu0
      %v318 = vadd.f32 %v265, %v317
      %v319 = vpop.f32.mrb[0].mxu0
      %v320 = vadd.f32 %v266, %v319
      %v321 = vpop.f32.mrb[0].mxu0
      %v322 = vpop.f32.mrb[0].mxu0
      %323 = vdwg.mxu0
      %324 = vst [vmem:[%s261] sm:$0xff] %v318
      %325 = vst [vmem:[%s261 + $0x8] sm:$0xff] %v320
      %s326 = scalar_lea.vmem %s241, 16
      %v327 = vld [vmem:[%s326] sm:$0xff]
      %v328 = vld [vmem:[%s326 + $0x8] sm:$0xff]
      %v331 = vunpack.c.l.b16 %v327
      %v332 = vunpack.c.h.b16 %v327
      %v333 = vunpack.c.l.b16 %v328
      %v334 = vunpack.c.h.b16 %v328
      %v335 = vpack.c.b16 %v333, %v331
      %v336 = vpack.c.b16 %v334, %v332
      %339 = vmatprep.subr.bf16.mxu0 %v336
      %340 = vmatpush1.bf16.msra.mxu0 %v335
      %341 = vmatprep.subr.bf16.mxu0 0
      %342 = vmatpush1.bf16.msra.mxu0 0
      %343 = vmatprep.subr.bf16.mxu0 0
      %344 = vmatpush1.bf16.msra.mxu0 0
      %345 = vmatprep.subr.bf16.mxu0 0
      %346 = vmatpush1.bf16.msra.mxu0 0
      %347 = vmatprep.subr.bf16.mxu0 0
      %348 = vmatpush1.bf16.msra.mxu0 0
      %349 = vmatprep.subr.bf16.mxu0 0
      %350 = vmatpush1.bf16.msra.mxu0 0
      %351 = vmatprep.subr.bf16.mxu0 0
      %352 = vmatpush1.bf16.msra.mxu0 0
      %353 = vmatprep.subr.bf16.mxu0 0
      %354 = vmatpush1.bf16.msra.mxu0 0
      %355 = vmatprep.subr.bf16.mxu0 0
      %356 = vmatpush1.bf16.msra.mxu0 0
      %357 = vmatprep.subr.bf16.mxu0 0
      %358 = vmatpush1.bf16.msra.mxu0 0
      %359 = vmatprep.subr.bf16.mxu0 0
      %360 = vmatpush1.bf16.msra.mxu0 0
      %361 = vmatprep.subr.bf16.mxu0 0
      %362 = vmatpush1.bf16.msra.mxu0 0
      %363 = vmatprep.subr.bf16.mxu0 0
      %364 = vmatpush1.bf16.msra.mxu0 0
      %365 = vmatprep.subr.bf16.mxu0 0
      %366 = vmatpush1.bf16.msra.mxu0 0
      %367 = vmatprep.subr.bf16.mxu0 0
      %368 = vmatpush1.bf16.msra.mxu0 0
      %369 = vmatprep.subr.bf16.mxu0 0
      %370 = vmatpush1.bf16.msra.mxu0 0
      %371 = vmatprep.mubr.bf16.mxu0 0
      %372 = vmatmul.mubr.bf16.gmra.mrb[0].mxu0 %v281
      %v373 = vpop.f32.mrb[0].mxu0
      %v374 = vadd.f32 %v265, %v373
      %v375 = vpop.f32.mrb[0].mxu0
      %v376 = vadd.f32 %v266, %v375
      %v377 = vpop.f32.mrb[0].mxu0
      %v378 = vpop.f32.mrb[0].mxu0
      %379 = vdwg.mxu0
      %s380 = scalar_lea.vmem %s261, 16
      %381 = vst [vmem:[%s380] sm:$0xff] %v374
      %382 = vst [vmem:[%s380 + $0x8] sm:$0xff] %v376
      %s383 = smul.u32 2, %s19
      %p384 = scmp.lt.s32.totalorder %s18, 3
      %s385 = scalar_select %p384, %s18, 3
      %p386 = scmp.lt.s32.totalorder %s383, 1
      %s387 = scalar_select %p386, %s383, 1
      %s388 = smul.addr %s385, 4
      %s389 = sadd.s32 %s387, %s388
      %s390 = smul.addr %s389, 8
      %s391 = scalar_lea.vmem %s3, %s390
      // Predicated region
      $region33: #{coord_conv_transpose.1} parent=31 // pred_check
        %p392 = pneg %p128
      $region34: #{coord_conv_transpose.1} parent=31 // pred_check_branch
        %394 = sbr.rel (%p392) target = $region36
      $region35: #{coord_conv_transpose.1} parent=31 // pred_region
        %s395 = smul.u32 2, %s19
      $region36: #{coord_conv_transpose.1} parent=31 // pred_fallthru
        _
    $region32: #{coord_conv_transpose.1} parent=5 // pred_fallthru
      _
    %p396 = scmp.le.s32.totalorder 2, %s9
    // Predicated region
    $region37: #{coord_conv_transpose.1} parent=5 // pred_check
      %p397 = pneg %p396
    $region38: #{coord_conv_transpose.1} parent=5 // pred_check_branch
      %399 = sbr.rel (%p397) target = $region40
    $region39: #{coord_conv_transpose.1} parent=5 // pred_region
      %s400 = ssub.s32 %s9, 2
      // Predicated region
      $region41: #{coord_conv_transpose.1} parent=39 // pred_check
        %p401 = pneg %p134
      $region42: #{coord_conv_transpose.1} parent=39 // pred_check_branch
        %403 = sbr.rel (%p401) target = $region44
      $region43: #{coord_conv_transpose.1} parent=39 // pred_region
        %s404 = smul.u32 2, %s21
        %p405 = scmp.lt.s32.totalorder %s20, 3
        %s406 = scalar_select %p405, %s20, 3
        %p407 = scmp.lt.s32.totalorder %s404, 1
        %s408 = scalar_select %p407, %s404, 1
        %s409 = smul.addr %s406, 4
        %s410 = sadd.s32 %s408, %s409
        %s411 = smul.addr %s410, 8
        %s412 = scalar_lea.vmem %s3, %s411
      $region44: #{coord_conv_transpose.1} parent=39 // pred_fallthru
        _
    $region40: #{coord_conv_transpose.1} parent=5 // pred_fallthru
      _
  $region6: #{coord_conv_transpose.1} parent=0 // loop_footer
    %s13 = sadd.s32 1, %s9
  $region7: #{coord_conv_transpose.1} parent=0 // loop_footer_branch
    %8 = sbr.rel target = $region3
  $region8: #{coord_conv_transpose.1} parent=0 // loop_exit
    _

</llo_original>
